<compile_context>
chip_gen: v5e
topology: v5e:2x2
jax: 0.10.0
libtpu: 0.0.40
codegen_flags: <defaults>
</compile_context>

<pallas_src>
import functools

import jax
import jax.numpy as jnp
from jax.experimental import pallas as pl
from jax.experimental.pallas import tpu as pltpu


def _round_up(x: int, m: int) -> int:
    return (x + m - 1) // m * m


def _mlp_fused_kernel(*refs, n_layers: int, compute_dtype):
    """refs = (x, w0, b0, w1, b1, ..., w_{L-1}, b_{L-1}, out)."""
    x_ref = refs[0]
    o_ref = refs[-1]
    wb = refs[1:-1]

    h = x_ref[...]                                   # native dtype -> MXU fast path
    for li in range(n_layers):                       # static unroll over layers
        w_ref = wb[2 * li]
        b_ref = wb[2 * li + 1]
        acc = jnp.dot(h, w_ref[...], preferred_element_type=jnp.float32)
        acc = acc + b_ref[...].astype(jnp.float32)   # (1, out) bias broadcasts, f32 epilogue
        if li < n_layers - 1:                        # last nonlinearity is popped in the module
            acc = jnp.maximum(acc, 0.0)              # ReLU in f32 (VPU)
            h = acc.astype(compute_dtype)            # back to compute dtype for the next dot
        else:
            h = acc
    o_ref[...] = h.astype(o_ref.dtype)


def mlp_forward(z, params, tile_b: int = 256):
    """Fused Pallas forward pass.

    z:      (B, n_latent)
    params: list of (w_t, b) with w_t: (in, out) (PyTorch weight transposed),
            b: (1, out).  Prepared once at init (no per-call padding/casting).
    """
    B, n_in = z.shape
    n_layers = len(params)
    sizes = [n_in] + [w_t.shape[1] for w_t, _ in params]
    compute_dtype = params[0][0].dtype
    out_dtype = jnp.result_type(z.dtype, compute_dtype)

    # Batch tile: multiple of 8 (sublane), <= requested, and small enough that the
    # grid has >= ~4 programs so both v7x TensorCores get work.
    tile_b = max(8, min(int(tile_b), _round_up(pl.cdiv(B, 4), 8)))
    b_pad = _round_up(B, tile_b)
    grid = (b_pad // tile_b,)

    z_p = z.astype(compute_dtype)
    if b_pad != B:
        z_p = jnp.pad(z_p, ((0, b_pad - B), (0, 0)))  # padded rows sliced off below

    flat_inputs = [z_p]
    for w_t, b in params:
        flat_inputs.append(w_t)
        flat_inputs.append(b)

    # VMEM budget: dtype-aware.  Double-buffered x/out tiles, single-buffered
    # resident weights, plus headroom for the unrolled-layer f32 temporaries.
    cbytes = jnp.dtype(compute_dtype).itemsize
    obytes = jnp.dtype(out_dtype).itemsize
    budget = 2 * tile_b * sizes[0] * cbytes + 2 * tile_b * sizes[-1] * obytes
    for a, b_ in zip(sizes[:-1], sizes[1:]):
        budget += (a * b_ + b_) * cbytes
    budget += 4 * tile_b * max(sizes) * 4
    try:
        vmem_cap = int(pltpu.get_tpu_info().vmem_capacity_bytes)
    except Exception:
        vmem_cap = 64 * 1024 * 1024
    vmem_limit = int(min(int(0.85 * vmem_cap), max(32 * 1024 * 1024, 2 * budget)))

    kernel = functools.partial(
        _mlp_fused_kernel, n_layers=n_layers, compute_dtype=compute_dtype)
    out_shape = jax.ShapeDtypeStruct((b_pad, sizes[-1]), out_dtype)

    def _call(single_buffer_weights: bool):
        in_specs = [pl.BlockSpec((tile_b, sizes[0]), lambda i: (i, 0))]  # streamed x tile
        for li in range(n_layers):
            w_shape = (sizes[li], sizes[li + 1])   # full-extent block: no feature padding
            b_shape = (1, sizes[li + 1])
            if single_buffer_weights:
                in_specs.append(pl.BlockSpec(w_shape, lambda i: (0, 0),
                                             pipeline_mode=pl.Buffered(1)))
                in_specs.append(pl.BlockSpec(b_shape, lambda i: (0, 0),
                                             pipeline_mode=pl.Buffered(1)))
            else:
                in_specs.append(pl.BlockSpec(w_shape, lambda i: (0, 0)))
                in_specs.append(pl.BlockSpec(b_shape, lambda i: (0, 0)))
        out_spec = pl.BlockSpec((tile_b, sizes[-1]), lambda i: (i, 0))
        return pl.pallas_call(
            kernel,
            out_shape=out_shape,
            grid=grid,
            in_specs=in_specs,
            out_specs=out_spec,
            compiler_params=pltpu.CompilerParams(
                dimension_semantics=("parallel",),   # batch axis: megacore-shardable
                vmem_limit_bytes=vmem_limit,
            ),
        )(*flat_inputs)

    try:
        out_p = _call(True)     # single-buffered resident weights (halves weight VMEM)
    except Exception:
        out_p = _call(False)    # fallback if Buffered(1) unsupported on this jax build

    return out_p[:B, :]


def init_mlp_params(key, n_latent, hidden_layers, n_dim, dtype=jnp.float32):
    """Mimics PyTorch nn.Linear default init (uniform +-1/sqrt(fan_in)).

    Layer sizes follow the module: [n_latent] + hidden_layers + [n_dim].
    Weights are stored pre-transposed as (in, out), biases as (1, out), in their
    final compute dtype — the one-time 'prepared' form consumed by mlp_forward.
    """
    sizes = [n_latent] + list(hidden_layers) + [n_dim]
    params = []
    for i in range(len(sizes) - 1):
        fan_in, fan_out = sizes[i], sizes[i + 1]
        key, wk, bk = jax.random.split(key, 3)
        bound = 1.0 / jnp.sqrt(fan_in)
        w_t = jax.random.uniform(wk, (fan_in, fan_out), dtype, -bound, bound)
        b = jax.random.uniform(bk, (1, fan_out), dtype, -bound, bound)
        params.append((w_t, b))
    return params


def mlp_reference(z, params):
    x = z
    n_layers = len(params)
    for i, (w_t, b) in enumerate(params):
        x = x @ w_t + b
        if i < n_layers - 1:
            x = jnp.maximum(x, 0.0)
    return x


if __name__ == "__main__":
    # MLP(n_latent=8, n_dim=16, layers=[32, 32]) -> layer sizes [8, 32, 32, 16];
    # input/output transforms are Identity; nonlinear_last=None (no final activation).
    n_latent, n_dim = 8, 16
    hidden = [32, 32]
    batch = 4

    key = jax.random.PRNGKey(0)
    key, zk = jax.random.split(key)
    z = jax.random.normal(zk, (batch, n_latent), jnp.float32)

    params = init_mlp_params(jax.random.PRNGKey(0), n_latent, hidden, n_dim)

    out = mlp_forward(z, params)
    out = jax.block_until_ready(out)

    ref = mlp_reference(z, params)
    assert out.shape == (batch, n_dim)
    assert jnp.allclose(out, ref, atol=1e-5, rtol=1e-5)
    print("KERNEL_OK")
</pallas_src>

<mosaic_0001>
module attributes {stable_mosaic.version = 11 : i64} {
  func.func @_mlp_fused_kernel(%arg0: i32, %arg1: memref<8x8xf32, #tpu.memory_space<vmem>>, %arg2: memref<8x32xf32, #tpu.memory_space<vmem>>, %arg3: memref<1x32xf32, #tpu.memory_space<vmem>>, %arg4: memref<32x32xf32, #tpu.memory_space<vmem>>, %arg5: memref<1x32xf32, #tpu.memory_space<vmem>>, %arg6: memref<32x16xf32, #tpu.memory_space<vmem>>, %arg7: memref<1x16xf32, #tpu.memory_space<vmem>>, %arg8: memref<8x16xf32, #tpu.memory_space<vmem>>) attributes {dimension_semantics = [#tpu.dimension_semantics<parallel>], iteration_bounds = array<i64: 1>, scalar_prefetch = 0 : i64, scratch_operands = 0 : i64, tpu.core_type = #tpu.core_type<tc>, window_params = [{transform_indices = @transform_0, window_bounds = array<i64: 8, 8>}, {pipeline_mode = #tpu.pipeline_mode<synchronous>, transform_indices = @transform_1, window_bounds = array<i64: 8, 32>}, {pipeline_mode = #tpu.pipeline_mode<synchronous>, transform_indices = @transform_2, window_bounds = array<i64: 1, 32>}, {pipeline_mode = #tpu.pipeline_mode<synchronous>, transform_indices = @transform_3, window_bounds = array<i64: 32, 32>}, {pipeline_mode = #tpu.pipeline_mode<synchronous>, transform_indices = @transform_4, window_bounds = array<i64: 1, 32>}, {pipeline_mode = #tpu.pipeline_mode<synchronous>, transform_indices = @transform_5, window_bounds = array<i64: 32, 16>}, {pipeline_mode = #tpu.pipeline_mode<synchronous>, transform_indices = @transform_6, window_bounds = array<i64: 1, 16>}, {transform_indices = @transform_7, window_bounds = array<i64: 8, 16>}]} {
    %c0 = arith.constant 0 : index
    %c0_0 = arith.constant 0 : index
    %0 = vector.load %arg1[%c0, %c0_0] : memref<8x8xf32, #tpu.memory_space<vmem>>, vector<8x8xf32>
    %c0_1 = arith.constant 0 : index
    %c0_2 = arith.constant 0 : index
    %1 = vector.load %arg2[%c0_1, %c0_2] : memref<8x32xf32, #tpu.memory_space<vmem>>, vector<8x32xf32>
    %cst = arith.constant dense<0.000000e+00> : vector<8x32xf32>
    %2 = tpu.matmul %0, %1, %cst {dimension_numbers = #tpu.dot_dimension_numbers<[1], [0], [0], [1], [0, 0, 1, 1], [], []>} : vector<8x8xf32>, vector<8x32xf32>, vector<8x32xf32> -> vector<8x32xf32>
    %c0_3 = arith.constant 0 : index
    %c0_4 = arith.constant 0 : index
    %3 = vector.load %arg3[%c0_3, %c0_4] : memref<1x32xf32, #tpu.memory_space<vmem>>, vector<1x32xf32>
    %4 = vector.broadcast %3 : vector<1x32xf32> to vector<8x32xf32>
    %5 = arith.addf %2, %4 : vector<8x32xf32>
    %cst_5 = arith.constant 0.000000e+00 : f32
    %6 = vector.broadcast %cst_5 : f32 to vector<8x32xf32>
    %7 = arith.maximumf %5, %6 : vector<8x32xf32>
    %c0_6 = arith.constant 0 : index
    %c0_7 = arith.constant 0 : index
    %8 = vector.load %arg4[%c0_6, %c0_7] : memref<32x32xf32, #tpu.memory_space<vmem>>, vector<32x32xf32>
    %cst_8 = arith.constant dense<0.000000e+00> : vector<8x32xf32>
    %9 = tpu.matmul %7, %8, %cst_8 {dimension_numbers = #tpu.dot_dimension_numbers<[1], [0], [0], [1], [0, 0, 1, 1], [], []>} : vector<8x32xf32>, vector<32x32xf32>, vector<8x32xf32> -> vector<8x32xf32>
    %c0_9 = arith.constant 0 : index
    %c0_10 = arith.constant 0 : index
    %10 = vector.load %arg5[%c0_9, %c0_10] : memref<1x32xf32, #tpu.memory_space<vmem>>, vector<1x32xf32>
    %11 = vector.broadcast %10 : vector<1x32xf32> to vector<8x32xf32>
    %12 = arith.addf %9, %11 : vector<8x32xf32>
    %cst_11 = arith.constant 0.000000e+00 : f32
    %13 = vector.broadcast %cst_11 : f32 to vector<8x32xf32>
    %14 = arith.maximumf %12, %13 : vector<8x32xf32>
    %c0_12 = arith.constant 0 : index
    %c0_13 = arith.constant 0 : index
    %15 = vector.load %arg6[%c0_12, %c0_13] : memref<32x16xf32, #tpu.memory_space<vmem>>, vector<32x16xf32>
    %cst_14 = arith.constant dense<0.000000e+00> : vector<8x16xf32>
    %16 = tpu.matmul %14, %15, %cst_14 {dimension_numbers = #tpu.dot_dimension_numbers<[1], [0], [0], [1], [0, 0, 1, 1], [], []>} : vector<8x32xf32>, vector<32x16xf32>, vector<8x16xf32> -> vector<8x16xf32>
    %c0_15 = arith.constant 0 : index
    %c0_16 = arith.constant 0 : index
    %17 = vector.load %arg7[%c0_15, %c0_16] : memref<1x16xf32, #tpu.memory_space<vmem>>, vector<1x16xf32>
    %18 = vector.broadcast %17 : vector<1x16xf32> to vector<8x16xf32>
    %19 = arith.addf %16, %18 : vector<8x16xf32>
    %c0_17 = arith.constant 0 : index
    %c0_18 = arith.constant 0 : index
    %20 = vector.load %arg8[%c0_17, %c0_18] : memref<8x16xf32, #tpu.memory_space<vmem>>, vector<8x16xf32>
    tpu.vector_store %arg8[%c0_17, %c0_18], %19 {strides = array<i32>} : memref<8x16xf32, #tpu.memory_space<vmem>>, vector<8x16xf32>,
    return
  }
  func.func @transform_0(%arg0: i32) -> (i32, i32) {
    %c0_i32 = arith.constant 0 : i32
    %c0_i32_0 = arith.constant 0 : i32
    return %arg0, %c0_i32 : i32, i32
  }
  func.func @transform_1(%arg0: i32) -> (i32, i32) {
    %c0_i32 = arith.constant 0 : i32
    %c0_i32_0 = arith.constant 0 : i32
    %c0_i32_1 = arith.constant 0 : i32
    return %c0_i32, %c0_i32_0 : i32, i32
  }
  func.func @transform_2(%arg0: i32) -> (i32, i32) {
    %c0_i32 = arith.constant 0 : i32
    %c0_i32_0 = arith.constant 0 : i32
    %c0_i32_1 = arith.constant 0 : i32
    return %c0_i32, %c0_i32_0 : i32, i32
  }
  func.func @transform_3(%arg0: i32) -> (i32, i32) {
    %c0_i32 = arith.constant 0 : i32
    %c0_i32_0 = arith.constant 0 : i32
    %c0_i32_1 = arith.constant 0 : i32
    return %c0_i32, %c0_i32_0 : i32, i32
  }
  func.func @transform_4(%arg0: i32) -> (i32, i32) {
    %c0_i32 = arith.constant 0 : i32
    %c0_i32_0 = arith.constant 0 : i32
    %c0_i32_1 = arith.constant 0 : i32
    return %c0_i32, %c0_i32_0 : i32, i32
  }
  func.func @transform_5(%arg0: i32) -> (i32, i32) {
    %c0_i32 = arith.constant 0 : i32
    %c0_i32_0 = arith.constant 0 : i32
    %c0_i32_1 = arith.constant 0 : i32
    return %c0_i32, %c0_i32_0 : i32, i32
  }
  func.func @transform_6(%arg0: i32) -> (i32, i32) {
    %c0_i32 = arith.constant 0 : i32
    %c0_i32_0 = arith.constant 0 : i32
    %c0_i32_1 = arith.constant 0 : i32
    return %c0_i32, %c0_i32_0 : i32, i32
  }
  func.func @transform_7(%arg0: i32) -> (i32, i32) {
    %c0_i32 = arith.constant 0 : i32
    %c0_i32_0 = arith.constant 0 : i32
    return %arg0, %c0_i32 : i32, i32
  }
}

module attributes {stable_mosaic.version = 11 : i64} {
  func.func @_mlp_fused_kernel(%arg0: i32, %arg1: memref<8x8xf32, #tpu.memory_space<vmem>>, %arg2: memref<8x32xf32, #tpu.memory_space<vmem>>, %arg3: memref<1x32xf32, #tpu.memory_space<vmem>>, %arg4: memref<32x32xf32, #tpu.memory_space<vmem>>, %arg5: memref<1x32xf32, #tpu.memory_space<vmem>>, %arg6: memref<32x16xf32, #tpu.memory_space<vmem>>, %arg7: memref<1x16xf32, #tpu.memory_space<vmem>>, %arg8: memref<8x16xf32, #tpu.memory_space<vmem>>) attributes {dimension_semantics = [#tpu.dimension_semantics<parallel>], iteration_bounds = array<i64: 1>, scalar_prefetch = 0 : i64, scratch_operands = 0 : i64, tpu.core_type = #tpu.core_type<tc>, window_params = [{transform_indices = @transform_0, window_bounds = array<i64: 8, 8>}, {pipeline_mode = #tpu.pipeline_mode<synchronous>, transform_indices = @transform_1, window_bounds = array<i64: 8, 32>}, {pipeline_mode = #tpu.pipeline_mode<synchronous>, transform_indices = @transform_2, window_bounds = array<i64: 1, 32>}, {pipeline_mode = #tpu.pipeline_mode<synchronous>, transform_indices = @transform_3, window_bounds = array<i64: 32, 32>}, {pipeline_mode = #tpu.pipeline_mode<synchronous>, transform_indices = @transform_4, window_bounds = array<i64: 1, 32>}, {pipeline_mode = #tpu.pipeline_mode<synchronous>, transform_indices = @transform_5, window_bounds = array<i64: 32, 16>}, {pipeline_mode = #tpu.pipeline_mode<synchronous>, transform_indices = @transform_6, window_bounds = array<i64: 1, 16>}, {transform_indices = @transform_7, window_bounds = array<i64: 8, 16>}]} {
    %c0 = arith.constant 0 : index
    %c0_0 = arith.constant 0 : index
    %0 = vector.load %arg1[%c0, %c0_0] : memref<8x8xf32, #tpu.memory_space<vmem>>, vector<8x8xf32>
    %c0_1 = arith.constant 0 : index
    %c0_2 = arith.constant 0 : index
    %1 = vector.load %arg2[%c0_1, %c0_2] : memref<8x32xf32, #tpu.memory_space<vmem>>, vector<8x32xf32>
    %cst = arith.constant dense<0.000000e+00> : vector<8x32xf32>
    %2 = tpu.matmul %0, %1, %cst {dimension_numbers = #tpu.dot_dimension_numbers<[1], [0], [0], [1], [0, 0, 1, 1], [], []>} : vector<8x8xf32>, vector<8x32xf32>, vector<8x32xf32> -> vector<8x32xf32>
    %c0_3 = arith.constant 0 : index
    %c0_4 = arith.constant 0 : index
    %3 = vector.load %arg3[%c0_3, %c0_4] : memref<1x32xf32, #tpu.memory_space<vmem>>, vector<1x32xf32>
    %4 = vector.broadcast %3 : vector<1x32xf32> to vector<8x32xf32>
    %5 = arith.addf %2, %4 : vector<8x32xf32>
    %cst_5 = arith.constant 0.000000e+00 : f32
    %6 = vector.broadcast %cst_5 : f32 to vector<8x32xf32>
    %7 = arith.maximumf %5, %6 : vector<8x32xf32>
    %c0_6 = arith.constant 0 : index
    %c0_7 = arith.constant 0 : index
    %8 = vector.load %arg4[%c0_6, %c0_7] : memref<32x32xf32, #tpu.memory_space<vmem>>, vector<32x32xf32>
    %cst_8 = arith.constant dense<0.000000e+00> : vector<8x32xf32>
    %9 = tpu.matmul %7, %8, %cst_8 {dimension_numbers = #tpu.dot_dimension_numbers<[1], [0], [0], [1], [0, 0, 1, 1], [], []>} : vector<8x32xf32>, vector<32x32xf32>, vector<8x32xf32> -> vector<8x32xf32>
    %c0_9 = arith.constant 0 : index
    %c0_10 = arith.constant 0 : index
    %10 = vector.load %arg5[%c0_9, %c0_10] : memref<1x32xf32, #tpu.memory_space<vmem>>, vector<1x32xf32>
    %11 = vector.broadcast %10 : vector<1x32xf32> to vector<8x32xf32>
    %12 = arith.addf %9, %11 : vector<8x32xf32>
    %cst_11 = arith.constant 0.000000e+00 : f32
    %13 = vector.broadcast %cst_11 : f32 to vector<8x32xf32>
    %14 = arith.maximumf %12, %13 : vector<8x32xf32>
    %c0_12 = arith.constant 0 : index
    %c0_13 = arith.constant 0 : index
    %15 = vector.load %arg6[%c0_12, %c0_13] : memref<32x16xf32, #tpu.memory_space<vmem>>, vector<32x16xf32>
    %cst_14 = arith.constant dense<0.000000e+00> : vector<8x16xf32>
    %16 = tpu.matmul %14, %15, %cst_14 {dimension_numbers = #tpu.dot_dimension_numbers<[1], [0], [0], [1], [0, 0, 1, 1], [], []>} : vector<8x32xf32>, vector<32x16xf32>, vector<8x16xf32> -> vector<8x16xf32>
    %c0_15 = arith.constant 0 : index
    %c0_16 = arith.constant 0 : index
    %17 = vector.load %arg7[%c0_15, %c0_16] : memref<1x16xf32, #tpu.memory_space<vmem>>, vector<1x16xf32>
    %18 = vector.broadcast %17 : vector<1x16xf32> to vector<8x16xf32>
    %19 = arith.addf %16, %18 : vector<8x16xf32>
    %c0_17 = arith.constant 0 : index
    %c0_18 = arith.constant 0 : index
    %20 = vector.load %arg8[%c0_17, %c0_18] : memref<8x16xf32, #tpu.memory_space<vmem>>, vector<8x16xf32>
    tpu.vector_store %arg8[%c0_17, %c0_18], %19 {strides = array<i32>} : memref<8x16xf32, #tpu.memory_space<vmem>>, vector<8x16xf32>,
    return
  }
  func.func @transform_0(%arg0: i32) -> (i32, i32) {
    %c0_i32 = arith.constant 0 : i32
    %c0_i32_0 = arith.constant 0 : i32
    return %arg0, %c0_i32 : i32, i32
  }
  func.func @transform_1(%arg0: i32) -> (i32, i32) {
    %c0_i32 = arith.constant 0 : i32
    %c0_i32_0 = arith.constant 0 : i32
    %c0_i32_1 = arith.constant 0 : i32
    return %c0_i32, %c0_i32_0 : i32, i32
  }
  func.func @transform_2(%arg0: i32) -> (i32, i32) {
    %c0_i32 = arith.constant 0 : i32
    %c0_i32_0 = arith.constant 0 : i32
    %c0_i32_1 = arith.constant 0 : i32
    return %c0_i32, %c0_i32_0 : i32, i32
  }
  func.func @transform_3(%arg0: i32) -> (i32, i32) {
    %c0_i32 = arith.constant 0 : i32
    %c0_i32_0 = arith.constant 0 : i32
    %c0_i32_1 = arith.constant 0 : i32
    return %c0_i32, %c0_i32_0 : i32, i32
  }
  func.func @transform_4(%arg0: i32) -> (i32, i32) {
    %c0_i32 = arith.constant 0 : i32
    %c0_i32_0 = arith.constant 0 : i32
    %c0_i32_1 = arith.constant 0 : i32
    return %c0_i32, %c0_i32_0 : i32, i32
  }
  func.func @transform_5(%arg0: i32) -> (i32, i32) {
    %c0_i32 = arith.constant 0 : i32
    %c0_i32_0 = arith.constant 0 : i32
    %c0_i32_1 = arith.constant 0 : i32
    return %c0_i32, %c0_i32_0 : i32, i32
  }
  func.func @transform_6(%arg0: i32) -> (i32, i32) {
    %c0_i32 = arith.constant 0 : i32
    %c0_i32_0 = arith.constant 0 : i32
    %c0_i32_1 = arith.constant 0 : i32
    return %c0_i32, %c0_i32_0 : i32, i32
  }
  func.func @transform_7(%arg0: i32) -> (i32, i32) {
    %c0_i32 = arith.constant 0 : i32
    %c0_i32_0 = arith.constant 0 : i32
    return %arg0, %c0_i32 : i32, i32
  }
}

</mosaic_0001>

<llo_original>
// kernel: tpu_custom_call.1
$region0: #{tpu_custom_call.1}
  #allocation0 [shape = 'u32[]', space=smem, size = 0x4, offset = 0x4, fixed_abs, tag = 'smem constant byte address 0x4 - core index']
  #allocation1 [shape = 'u32[72,128]{1,0:T(1,128)}', space=vmem, size = 0x9000, scoped, tag = 'internal scratch']
  %s0 = inlined_call_operand.vmem [shape: f32[8,8], index: 0, kind: input, shape index: {}]
  %s1 = inlined_call_operand.vmem [shape: f32[8,32], index: 1, kind: input, shape index: {}]
  %s2 = inlined_call_operand.vmem [shape: f32[1,32], index: 2, kind: input, shape index: {}]
  %s3 = inlined_call_operand.vmem [shape: f32[32,32], index: 3, kind: input, shape index: {}]
  %s4 = inlined_call_operand.vmem [shape: f32[1,32], index: 4, kind: input, shape index: {}]
  %s5 = inlined_call_operand.vmem [shape: f32[32,16], index: 5, kind: input, shape index: {}]
  %s6 = inlined_call_operand.vmem [shape: f32[1,16], index: 6, kind: input, shape index: {}]
  %s7 = inlined_call_operand.hbm [shape: f32[8,16], index: 7, kind: output, shape index: {}]
  %s8 = sld [smem:[#allocation0]]
  $region38: #{tpu_custom_call.1} parent=0
    _
  %s10 = ssub.s32 1, %s8
  %s11 = scalar_select 0, %s10, %s8
  $region1: #{tpu_custom_call.1} parent=0
    #allocation2 [shape = 'u8[4096]{0}', space=vmem, size = 0x1000, scoped, tag = 'output window, operand 0, single buffered']
    #allocation3 [shape = 's32[1]{0}', space=sflag, size = 0x4, scoped, tag = 'scoped memory for tpu_custom_call.1']
    %12 = vsyncpa [#allocation3], 0
    // Predicated region
    $region2: #{tpu_custom_call.1} parent=1 // pred_check
      _
    $region3: #{tpu_custom_call.1} parent=1 // pred_check_branch
      %14 = sbr.rel (0) target = $region5
    $region4: #{tpu_custom_call.1} parent=1 // pred_region
      _
    $region5: #{tpu_custom_call.1} parent=1 // pred_fallthru
      _
    // Predicated region
    $region6: #{tpu_custom_call.1} parent=1 // pred_check
      _
    $region7: #{tpu_custom_call.1} parent=1 // pred_check_branch
      %16 = sbr.rel (0) target = $region9
    $region8: #{tpu_custom_call.1} parent=1 // pred_region
      _
    $region9: #{tpu_custom_call.1} parent=1 // pred_fallthru
      _
    // Predicated region
    $region10: #{tpu_custom_call.1} parent=1 // pred_check
      _
    $region11: #{tpu_custom_call.1} parent=1 // pred_check_branch
      %18 = sbr.rel (0) target = $region13
    $region12: #{tpu_custom_call.1} parent=1 // pred_region
      _
    $region13: #{tpu_custom_call.1} parent=1 // pred_fallthru
      _
    // Predicated region
    $region14: #{tpu_custom_call.1} parent=1 // pred_check
      _
    $region15: #{tpu_custom_call.1} parent=1 // pred_check_branch
      %20 = sbr.rel (0) target = $region17
    $region16: #{tpu_custom_call.1} parent=1 // pred_region
      _
    $region17: #{tpu_custom_call.1} parent=1 // pred_fallthru
      _
    // Predicated region
    $region18: #{tpu_custom_call.1} parent=1 // pred_check
      _
    $region19: #{tpu_custom_call.1} parent=1 // pred_check_branch
      %22 = sbr.rel (0) target = $region21
    $region20: #{tpu_custom_call.1} parent=1 // pred_region
      _
    $region21: #{tpu_custom_call.1} parent=1 // pred_fallthru
      _
    // Predicated region
    $region22: #{tpu_custom_call.1} parent=1 // pred_check
      _
    $region23: #{tpu_custom_call.1} parent=1 // pred_check_branch
      %24 = sbr.rel (0) target = $region25
    $region24: #{tpu_custom_call.1} parent=1 // pred_region
      _
    $region25: #{tpu_custom_call.1} parent=1 // pred_fallthru
      _
    // Predicated region
    $region26: #{tpu_custom_call.1} parent=1 // pred_check
      _
    $region27: #{tpu_custom_call.1} parent=1 // pred_check_branch
      %26 = sbr.rel (0) target = $region29
    $region28: #{tpu_custom_call.1} parent=1 // pred_region
      _
    $region29: #{tpu_custom_call.1} parent=1 // pred_fallthru
      _
    %v27 = vld [vmem:[%s0] sm:$0xff]
    %v28 = vld [vmem:[%s1] sm:$0xff]
    %v29 = vld [vmem:[%s2] sm:$0x1]
    %v31 = vperm.slane %v29, 0
    %vm33 = vcmask 64512
    %v35 = vsel %vm33, %v27, 0
    %37 = vmatpush.msra.mxu0 0.0
    %38 = vmatpush.msra.mxu0 0.0
    %39 = vmatpush.msra.mxu0 0.0
    %40 = vmatpush.msra.mxu0 0.0
    %41 = vmatpush.msra.mxu0 0.0
    %42 = vmatpush.msra.mxu0 0.0
    %43 = vmatpush.msra.mxu0 0.0
    %44 = vmatpush.msra.mxu0 0.0
    %45 = vmatpush.msra.mxu0 0.0
    %46 = vmatpush.msra.mxu0 0.0
    %47 = vmatpush.msra.mxu0 0.0
    %48 = vmatpush.msra.mxu0 0.0
    %49 = vmatpush.msra.mxu0 0.0
    %50 = vmatpush.msra.mxu0 0.0
    %51 = vmatpush.msra.mxu0 0.0
    %52 = vmatpush.msra.mxu0 %v28
    %53 = vmatmul.f32.gmra.mxu0 %v35
    %v54 = vpop.f32.mrf.mxu0
    %v55 = vadd.f32 %v31, %v54
    %56 = vdwg.mxu0
    %v57 = vmax.f32 %v55, 0.0
    %v58 = vld [vmem:[%s3] sm:$0xff]
    %v59 = vld [vmem:[%s3 + $0x8] sm:$0xff]
    %v60 = vld [vmem:[%s3 + $0x10] sm:$0xff]
    %v61 = vld [vmem:[%s3 + $0x18] sm:$0xff]
    %v62 = vld [vmem:[%s4] sm:$0x1]
    %v64 = vperm.slane %v62, 0
    %vm66 = vcmask 261120
    %v68 = vsel %vm66, %v57, 0
    %70 = vmatpush.msra.mxu0 0.0
    %71 = vmatpush.msra.mxu0 0.0
    %72 = vmatpush.msra.mxu0 0.0
    %73 = vmatpush.msra.mxu0 0.0
    %74 = vmatpush.msra.mxu0 0.0
    %75 = vmatpush.msra.mxu0 0.0
    %76 = vmatpush.msra.mxu0 0.0
    %77 = vmatpush.msra.mxu0 0.0
    %78 = vmatpush.msra.mxu0 0.0
    %79 = vmatpush.msra.mxu0 0.0
    %80 = vmatpush.msra.mxu0 0.0
    %81 = vmatpush.msra.mxu0 0.0
    %82 = vmatpush.msra.mxu0 %v61
    %83 = vmatpush.msra.mxu0 %v60
    %84 = vmatpush.msra.mxu0 %v59
    %85 = vmatpush.msra.mxu0 %v58
    %86 = vmatmul.f32.gmra.mxu0 %v68
    %v87 = vpop.f32.mrf.mxu0
    %v88 = vadd.f32 %v64, %v87
    %89 = vdwg.mxu0
    %v90 = vmax.f32 %v88, 0.0
    %v91 = vld [vmem:[%s5] sm:$0xff]
    %v92 = vld [vmem:[%s5 + $0x8] sm:$0xff]
    %v93 = vld [vmem:[%s5 + $0x10] sm:$0xff]
    %v94 = vld [vmem:[%s5 + $0x18] sm:$0xff]
    %v95 = vld [vmem:[%s6] sm:$0x1]
    %v97 = vperm.slane %v95, 0
    %v100 = vsel %vm66, %v90, 0
    %102 = vmatpush.msra.mxu0 0.0
    %103 = vmatpush.msra.mxu0 0.0
    %104 = vmatpush.msra.mxu0 0.0
    %105 = vmatpush.msra.mxu0 0.0
    %106 = vmatpush.msra.mxu0 0.0
    %107 = vmatpush.msra.mxu0 0.0
    %108 = vmatpush.msra.mxu0 0.0
    %109 = vmatpush.msra.mxu0 0.0
    %110 = vmatpush.msra.mxu0 0.0
    %111 = vmatpush.msra.mxu0 0.0
    %112 = vmatpush.msra.mxu0 0.0
    %113 = vmatpush.msra.mxu0 0.0
    %114 = vmatpush.msra.mxu0 %v94
    %115 = vmatpush.msra.mxu0 %v93
    %116 = vmatpush.msra.mxu0 %v92
    %117 = vmatpush.msra.mxu0 %v91
    %118 = vmatmul.f32.gmra.mxu0 %v100
    %v119 = vpop.f32.mrf.mxu0
    %v120 = vadd.f32 %v97, %v119
    %121 = vdwg.mxu0
    %vm122 = vcmask 130048
    %123 = vst.msk [vmem:[#allocation2] sm:$0xff] %vm122, %v120
    // Predicated region
    $region30: #{tpu_custom_call.1} parent=1 // pred_check
      _
    $region31: #{tpu_custom_call.1} parent=1 // pred_check_branch
      %125 = sbr.rel (0) target = $region33
    $region32: #{tpu_custom_call.1} parent=1 // pred_region
      %127 = vsyncadd [#allocation3], 0
      %s129 = sshll.u32 [#allocation2], 4
      %s130 = int_to_ptr.vmem [resolvable:$true] %s129
      %s131 = sshll.u32 %s7, 4
      %s132 = int_to_ptr.hbm [resolvable:$true] %s131
      %134 = dma.vmem_to_hbm [thread:$0]  %s130, 128, %s132, [#allocation3]
    $region33: #{tpu_custom_call.1} parent=1 // pred_fallthru
      _
    // Predicated region
    $region34: #{tpu_custom_call.1} parent=1 // pred_check
      _
    $region35: #{tpu_custom_call.1} parent=1 // pred_check_branch
      %136 = sbr.rel (0) target = $region37
    $region36: #{tpu_custom_call.1} parent=1 // pred_region
      %138 = dma.done [#allocation3], 128
    $region37: #{tpu_custom_call.1} parent=1 // pred_fallthru
      _
    %139 = vsyncpa [#allocation3], 1

// kernel: tpu_custom_call.1
$region0: #{tpu_custom_call.1}
  #allocation0 [shape = 'u32[]', space=smem, size = 0x4, offset = 0x4, fixed_abs, tag = 'smem constant byte address 0x4 - core index']
  #allocation1 [shape = 'u32[72,128]{1,0:T(1,128)}', space=vmem, size = 0x9000, scoped, tag = 'internal scratch']
  %s0 = inlined_call_operand.vmem [shape: f32[8,8], index: 0, kind: input, shape index: {}]
  %s1 = inlined_call_operand.vmem [shape: f32[8,32], index: 1, kind: input, shape index: {}]
  %s2 = inlined_call_operand.vmem [shape: f32[1,32], index: 2, kind: input, shape index: {}]
  %s3 = inlined_call_operand.vmem [shape: f32[32,32], index: 3, kind: input, shape index: {}]
  %s4 = inlined_call_operand.vmem [shape: f32[1,32], index: 4, kind: input, shape index: {}]
  %s5 = inlined_call_operand.vmem [shape: f32[32,16], index: 5, kind: input, shape index: {}]
  %s6 = inlined_call_operand.vmem [shape: f32[1,16], index: 6, kind: input, shape index: {}]
  %s7 = inlined_call_operand.hbm [shape: f32[8,16], index: 7, kind: output, shape index: {}]
  %s8 = sld [smem:[#allocation0]]
  $region38: #{tpu_custom_call.1} parent=0
    _
  %s10 = ssub.s32 1, %s8
  %s11 = scalar_select 0, %s10, %s8
  $region1: #{tpu_custom_call.1} parent=0
    #allocation2 [shape = 'u8[4096]{0}', space=vmem, size = 0x1000, scoped, tag = 'output window, operand 0, single buffered']
    #allocation3 [shape = 's32[1]{0}', space=sflag, size = 0x4, scoped, tag = 'scoped memory for tpu_custom_call.1']
    %12 = vsyncpa [#allocation3], 0
    // Predicated region
    $region2: #{tpu_custom_call.1} parent=1 // pred_check
      _
    $region3: #{tpu_custom_call.1} parent=1 // pred_check_branch
      %14 = sbr.rel (0) target = $region5
    $region4: #{tpu_custom_call.1} parent=1 // pred_region
      _
    $region5: #{tpu_custom_call.1} parent=1 // pred_fallthru
      _
    // Predicated region
    $region6: #{tpu_custom_call.1} parent=1 // pred_check
      _
    $region7: #{tpu_custom_call.1} parent=1 // pred_check_branch
      %16 = sbr.rel (0) target = $region9
    $region8: #{tpu_custom_call.1} parent=1 // pred_region
      _
    $region9: #{tpu_custom_call.1} parent=1 // pred_fallthru
      _
    // Predicated region
    $region10: #{tpu_custom_call.1} parent=1 // pred_check
      _
    $region11: #{tpu_custom_call.1} parent=1 // pred_check_branch
      %18 = sbr.rel (0) target = $region13
    $region12: #{tpu_custom_call.1} parent=1 // pred_region
      _
    $region13: #{tpu_custom_call.1} parent=1 // pred_fallthru
      _
    // Predicated region
    $region14: #{tpu_custom_call.1} parent=1 // pred_check
      _
    $region15: #{tpu_custom_call.1} parent=1 // pred_check_branch
      %20 = sbr.rel (0) target = $region17
    $region16: #{tpu_custom_call.1} parent=1 // pred_region
      _
    $region17: #{tpu_custom_call.1} parent=1 // pred_fallthru
      _
    // Predicated region
    $region18: #{tpu_custom_call.1} parent=1 // pred_check
      _
    $region19: #{tpu_custom_call.1} parent=1 // pred_check_branch
      %22 = sbr.rel (0) target = $region21
    $region20: #{tpu_custom_call.1} parent=1 // pred_region
      _
    $region21: #{tpu_custom_call.1} parent=1 // pred_fallthru
      _
    // Predicated region
    $region22: #{tpu_custom_call.1} parent=1 // pred_check
      _
    $region23: #{tpu_custom_call.1} parent=1 // pred_check_branch
      %24 = sbr.rel (0) target = $region25
    $region24: #{tpu_custom_call.1} parent=1 // pred_region
      _
    $region25: #{tpu_custom_call.1} parent=1 // pred_fallthru
      _
    // Predicated region
    $region26: #{tpu_custom_call.1} parent=1 // pred_check
      _
    $region27: #{tpu_custom_call.1} parent=1 // pred_check_branch
      %26 = sbr.rel (0) target = $region29
    $region28: #{tpu_custom_call.1} parent=1 // pred_region
      _
    $region29: #{tpu_custom_call.1} parent=1 // pred_fallthru
      _
    %v27 = vld [vmem:[%s0] sm:$0xff]
    %v28 = vld [vmem:[%s1] sm:$0xff]
    %v29 = vld [vmem:[%s2] sm:$0x1]
    %v31 = vperm.slane %v29, 0
    %vm33 = vcmask 64512
    %v35 = vsel %vm33, %v27, 0
    %37 = vmatpush.msra.mxu0 0.0
    %38 = vmatpush.msra.mxu0 0.0
    %39 = vmatpush.msra.mxu0 0.0
    %40 = vmatpush.msra.mxu0 0.0
    %41 = vmatpush.msra.mxu0 0.0
    %42 = vmatpush.msra.mxu0 0.0
    %43 = vmatpush.msra.mxu0 0.0
    %44 = vmatpush.msra.mxu0 0.0
    %45 = vmatpush.msra.mxu0 0.0
    %46 = vmatpush.msra.mxu0 0.0
    %47 = vmatpush.msra.mxu0 0.0
    %48 = vmatpush.msra.mxu0 0.0
    %49 = vmatpush.msra.mxu0 0.0
    %50 = vmatpush.msra.mxu0 0.0
    %51 = vmatpush.msra.mxu0 0.0
    %52 = vmatpush.msra.mxu0 %v28
    %53 = vmatmul.f32.gmra.mxu0 %v35
    %v54 = vpop.f32.mrf.mxu0
    %v55 = vadd.f32 %v31, %v54
    %56 = vdwg.mxu0
    %v57 = vmax.f32 %v55, 0.0
    %v58 = vld [vmem:[%s3] sm:$0xff]
    %v59 = vld [vmem:[%s3 + $0x8] sm:$0xff]
    %v60 = vld [vmem:[%s3 + $0x10] sm:$0xff]
    %v61 = vld [vmem:[%s3 + $0x18] sm:$0xff]
    %v62 = vld [vmem:[%s4] sm:$0x1]
    %v64 = vperm.slane %v62, 0
    %vm66 = vcmask 261120
    %v68 = vsel %vm66, %v57, 0
    %70 = vmatpush.msra.mxu0 0.0
    %71 = vmatpush.msra.mxu0 0.0
    %72 = vmatpush.msra.mxu0 0.0
    %73 = vmatpush.msra.mxu0 0.0
    %74 = vmatpush.msra.mxu0 0.0
    %75 = vmatpush.msra.mxu0 0.0
    %76 = vmatpush.msra.mxu0 0.0
    %77 = vmatpush.msra.mxu0 0.0
    %78 = vmatpush.msra.mxu0 0.0
    %79 = vmatpush.msra.mxu0 0.0
    %80 = vmatpush.msra.mxu0 0.0
    %81 = vmatpush.msra.mxu0 0.0
    %82 = vmatpush.msra.mxu0 %v61
    %83 = vmatpush.msra.mxu0 %v60
    %84 = vmatpush.msra.mxu0 %v59
    %85 = vmatpush.msra.mxu0 %v58
    %86 = vmatmul.f32.gmra.mxu0 %v68
    %v87 = vpop.f32.mrf.mxu0
    %v88 = vadd.f32 %v64, %v87
    %89 = vdwg.mxu0
    %v90 = vmax.f32 %v88, 0.0
    %v91 = vld [vmem:[%s5] sm:$0xff]
    %v92 = vld [vmem:[%s5 + $0x8] sm:$0xff]
    %v93 = vld [vmem:[%s5 + $0x10] sm:$0xff]
    %v94 = vld [vmem:[%s5 + $0x18] sm:$0xff]
    %v95 = vld [vmem:[%s6] sm:$0x1]
    %v97 = vperm.slane %v95, 0
    %v100 = vsel %vm66, %v90, 0
    %102 = vmatpush.msra.mxu0 0.0
    %103 = vmatpush.msra.mxu0 0.0
    %104 = vmatpush.msra.mxu0 0.0
    %105 = vmatpush.msra.mxu0 0.0
    %106 = vmatpush.msra.mxu0 0.0
    %107 = vmatpush.msra.mxu0 0.0
    %108 = vmatpush.msra.mxu0 0.0
    %109 = vmatpush.msra.mxu0 0.0
    %110 = vmatpush.msra.mxu0 0.0
    %111 = vmatpush.msra.mxu0 0.0
    %112 = vmatpush.msra.mxu0 0.0
    %113 = vmatpush.msra.mxu0 0.0
    %114 = vmatpush.msra.mxu0 %v94
    %115 = vmatpush.msra.mxu0 %v93
    %116 = vmatpush.msra.mxu0 %v92
    %117 = vmatpush.msra.mxu0 %v91
    %118 = vmatmul.f32.gmra.mxu0 %v100
    %v119 = vpop.f32.mrf.mxu0
    %v120 = vadd.f32 %v97, %v119
    %121 = vdwg.mxu0
    %vm122 = vcmask 130048
    %123 = vst.msk [vmem:[#allocation2] sm:$0xff] %vm122, %v120
    // Predicated region
    $region30: #{tpu_custom_call.1} parent=1 // pred_check
      _
    $region31: #{tpu_custom_call.1} parent=1 // pred_check_branch
      %125 = sbr.rel (0) target = $region33
    $region32: #{tpu_custom_call.1} parent=1 // pred_region
      %127 = vsyncadd [#allocation3], 0
      %s129 = sshll.u32 [#allocation2], 4
      %s130 = int_to_ptr.vmem [resolvable:$true] %s129
      %s131 = sshll.u32 %s7, 4
      %s132 = int_to_ptr.hbm [resolvable:$true] %s131
      %134 = dma.vmem_to_hbm [thread:$0]  %s130, 128, %s132, [#allocation3]
    $region33: #{tpu_custom_call.1} parent=1 // pred_fallthru
      _
    // Predicated region
    $region34: #{tpu_custom_call.1} parent=1 // pred_check
      _
    $region35: #{tpu_custom_call.1} parent=1 // pred_check_branch
      %136 = sbr.rel (0) target = $region37
    $region36: #{tpu_custom_call.1} parent=1 // pred_region
      %138 = dma.done [#allocation3], 128
    $region37: #{tpu_custom_call.1} parent=1 // pred_fallthru
      _
    %139 = vsyncpa [#allocation3], 1

</llo_original>
